<compile_context>
chip_gen: v6e
topology: v6e:2x2x1
jax: 0.10.0
libtpu: 0.0.40
codegen_flags: <defaults>
</compile_context>

<pallas_src>
import jax
import jax.numpy as jnp
from jax import lax
from jax.experimental import pallas as pl
from jax.experimental.pallas import tpu as pltpu


_CHUNK_ROWS = 8          # sublanes per chunk
_LANES = 128             # lanes
_CHUNK_PTS = _CHUNK_ROWS * _LANES   # 1024 points per grid step


# ---------------------------------------------------------------------------
# Pallas kernel: for one (batch, point-chunk) grid step, accumulate the
# in-front-of-both-cameras counts of all 4 (R, t) hypotheses.
#
# Inputs:
#   c_ref    : (4, 8, 128) VMEM  channels [x1, y1, x2, y2], 1024 points
#   kinv_ref : (1, 9)  SMEM  flattened K^-1 (row major)
#   rs_ref   : (B, 18) SMEM  2 flattened 3x3 rotations per batch (r_1, r_2)
#   ts_ref   : (B, 3)  SMEM  proposed translation t per batch
#   inv2_ref : (B, 8)  SMEM  3rd row of inverse(tf) for (r_1,+t) and (r_2,+t)
# Output:
#   out_ref  : (B, 4)  SMEM int32 counts, hypothesis order
#              [(r1,+t), (r2,+t), (r1,-t), (r2,-t)]
# ---------------------------------------------------------------------------
def _make_score_kernel(n_valid):
    def kernel(c_ref, kinv_ref, rs_ref, ts_ref, inv2_ref, out_ref):
        b = pl.program_id(0)
        ci = pl.program_id(1)

        # zero the 4 counters of this batch element on the first chunk
        @pl.when(ci == 0)
        def _init():
            for h in range(4):
                out_ref[b, h] = jnp.int32(0)

        x1 = c_ref[0]            # (8, 128)
        y1 = c_ref[1]
        x2 = c_ref[2]
        y2 = c_ref[3]

        # validity mask for padded points
        row = lax.broadcasted_iota(jnp.int32, (_CHUNK_ROWS, _LANES), 0)
        lane = lax.broadcasted_iota(jnp.int32, (_CHUNK_ROWS, _LANES), 1)
        point_idx = ci * _CHUNK_PTS + row * _LANES + lane
        valid = point_idx < n_valid

        k = [kinv_ref[0, i] for i in range(9)]

        # p1 = K^-1 @ [x1, y1, 1]^T ; p2 = K^-1 @ [x2, y2, 1]^T   (per point)
        p1x = k[0] * x1 + k[1] * y1 + k[2]
        p1y = k[3] * x1 + k[4] * y1 + k[5]
        p1z = k[6] * x1 + k[7] * y1 + k[8]
        p2x = k[0] * x2 + k[1] * y2 + k[2]
        p2y = k[3] * x2 + k[4] * y2 + k[5]
        p2z = k[6] * x2 + k[7] * y2 + k[8]

        t0 = ts_ref[b, 0]
        t1 = ts_ref[b, 1]
        t2 = ts_ref[b, 2]

        # loop over the 2 rotations; +t / -t hypotheses share all geometry:
        # flipping t exactly negates the triangulated point p and (up to the
        # rounding of the 4x4 inverse) negates the camera-2 depth z2, so the
        # -t count is just sum((pz < 0) & (z2 < 0)).
        for h in range(2):
            r = [rs_ref[b, h * 9 + i] for i in range(9)]
            ir = [inv2_ref[b, h * 4 + i] for i in range(4)]

            # d1 = p1 ; d2 = R @ p2
            d1x, d1y, d1z = p1x, p1y, p1z
            d2x = r[0] * p2x + r[1] * p2y + r[2] * p2z
            d2y = r[3] * p2x + r[4] * p2y + r[5] * p2z
            d2z = r[6] * p2x + r[7] * p2y + r[8] * p2z

            # c = d2 x d1
            cx = d2y * d1z - d2z * d1y
            cy = d2z * d1x - d2x * d1z
            cz = d2x * d1y - d2y * d1x
            # n1 = d1 x (d2 x d1) = d1 x c
            n1x = d1y * cz - d1z * cy
            n1y = d1z * cx - d1x * cz
            n1z = d1x * cy - d1y * cx
            # n2 = d2 x (d1 x d2) = d2 x (-c) = c x d2   (no separate e needed)
            n2x = cy * d2z - cz * d2y
            n2y = cz * d2x - cx * d2z
            n2z = cx * d2y - cy * d2x

            # a1 = (t.n2)/(d1.n2) * d1
            tn2 = t0 * n2x + t1 * n2y + t2 * n2z
            d1n2 = d1x * n2x + d1y * n2y + d1z * n2z
            s1 = tn2 * pl.reciprocal(d1n2, approx=True)
            a1x = s1 * d1x
            a1y = s1 * d1y
            a1z = s1 * d1z

            # a2 = t + (-t.n1)/(d2.n1) * d2
            mtn1 = -(t0 * n1x + t1 * n1y + t2 * n1z)
            d2n1 = d2x * n1x + d2y * n1y + d2z * n1z
            s2 = mtn1 * pl.reciprocal(d2n1, approx=True)
            a2x = t0 + s2 * d2x
            a2y = t1 + s2 * d2y
            a2z = t2 + s2 * d2z

            # mid-point triangulation (for the +t hypothesis)
            px = (a1x + a2x) * 0.5
            py = (a1y + a2y) * 0.5
            pz = (a1z + a2z) * 0.5

            # depth in camera 2 (for the +t hypothesis)
            z2 = ir[0] * px + ir[1] * py + ir[2] * pz + ir[3]

            front_pos = (pz > 0.0) & (z2 > 0.0) & valid
            front_neg = (pz < 0.0) & (z2 < 0.0) & valid

            cnt_pos = jnp.sum(front_pos.astype(jnp.int32))
            cnt_neg = jnp.sum(front_neg.astype(jnp.int32))

            out_ref[b, h] = out_ref[b, h] + cnt_pos          # (r_h, +t)
            out_ref[b, h + 2] = out_ref[b, h + 2] + cnt_neg  # (r_h, -t)

    return kernel


def score_points_in_front(c2d2d, k_inv, rs2, t_proposed, inv_row2):
    """Counts of points in front of both cameras for the 4 (R, t) hypotheses.

    c2d2d      : (B, N, 4) pixel correspondences [x1, y1, x2, y2]
    k_inv      : (3, 3)
    rs2        : (B, 2, 3, 3)  rotations r_1, r_2
    t_proposed : (B, 3)
    inv_row2   : (B, 2, 4)     3rd row of inverse(tf) for the +t hypotheses
    returns    : (B, 4) int32, order [(r1,+t), (r2,+t), (r1,-t), (r2,-t)]
    """
    B, N, _ = c2d2d.shape
    n_pad = ((N + _CHUNK_PTS - 1) // _CHUNK_PTS) * _CHUNK_PTS
    num_chunks = n_pad // _CHUNK_PTS
    s_rows = n_pad // _LANES        # multiple of 8

    # one layout pass: pad -> channel-major -> sublane/lane packed
    c_pad = jnp.pad(c2d2d.astype(jnp.float32), ((0, 0), (0, n_pad - N), (0, 0)))
    c_packed = jnp.transpose(c_pad, (0, 2, 1)).reshape(B, 4, s_rows, _LANES)

    kinv_flat = k_inv.reshape(1, 9).astype(jnp.float32)
    rs_flat = rs2.reshape(B, 18).astype(jnp.float32)
    ts_flat = t_proposed.reshape(B, 3).astype(jnp.float32)
    inv2_flat = inv_row2.reshape(B, 8).astype(jnp.float32)

    kernel = _make_score_kernel(n_valid=N)

    counts = pl.pallas_call(
        kernel,
        out_shape=jax.ShapeDtypeStruct((B, 4), jnp.int32),
        grid=(B, num_chunks),
        in_specs=[
            pl.BlockSpec((None, 4, _CHUNK_ROWS, _LANES),
                         lambda b, c: (b, 0, c, 0)),                   # VMEM
            pl.BlockSpec(memory_space=pltpu.MemorySpace.SMEM),          # K^-1
            pl.BlockSpec(memory_space=pltpu.MemorySpace.SMEM),          # R's
            pl.BlockSpec(memory_space=pltpu.MemorySpace.SMEM),          # t
            pl.BlockSpec(memory_space=pltpu.MemorySpace.SMEM),          # inv rows
        ],
        out_specs=pl.BlockSpec(memory_space=pltpu.MemorySpace.SMEM),
        compiler_params=pltpu.CompilerParams(
            # output counts live unblocked in SMEM and are accumulated across
            # both grid axes, so both axes must stay "arbitrary" (a parallel
            # batch axis on v7x would race on the resident SMEM buffer).
            dimension_semantics=("arbitrary", "arbitrary")),
    )(c_packed, kinv_flat, rs_flat, ts_flat, inv2_flat)
    return counts


# ---------------------------------------------------------------------------
# Full forward pass (glue in plain JAX, hot path in the Pallas kernel above).
# ---------------------------------------------------------------------------
def essential_to_pose(x, k_matrix):
    essential_raw = x["essential_raw"].astype(jnp.float32)   # (B, 3, 3)
    c2d2d = x["c2d2d"].astype(jnp.float32)                    # (B, N, 4)
    B = essential_raw.shape[0]

    k_inv = jnp.linalg.inv(k_matrix.astype(jnp.float32))

    # TODO(synk): 3x3 SVD / det-sign / 4x4 inverse have no Pallas equivalent;
    # they are tiny per-batch linear algebra done in plain JAX.
    U, S, Vh = jnp.linalg.svd(essential_raw)
    V = jnp.swapaxes(Vh, -2, -1)
    u = U * jnp.sign(jnp.linalg.det(U))[:, None, None]
    v = V * jnp.sign(jnp.linalg.det(V))[:, None, None]
    last_svs = S[:, -1]

    w = jnp.array([[0.0, -1.0, 0.0],
                   [1.0, 0.0, 0.0],
                   [0.0, 0.0, 1.0]], dtype=jnp.float32)

    ut = jnp.swapaxes(u, -2, -1)
    r_1 = v @ w @ ut
    r_2 = v @ w.T @ ut
    t_proposed = v[:, :, 2]                                    # (B, 3)

    # only the 2 rotations are needed by the kernel; -t is handled by sign
    # symmetry inside the kernel.
    rs2 = jnp.stack([r_1, r_2], axis=1)                        # (B, 2, 3, 3)
    tf = jnp.tile(jnp.eye(4, dtype=jnp.float32), (B, 2, 1, 1))
    tf = tf.at[:, :, :3, :3].set(rs2)
    tf = tf.at[:, :, :3, 3].set(t_proposed[:, None, :])
    inv_row2 = jnp.linalg.inv(tf)[:, :, 2, :]                  # (B, 2, 4)

    counts = score_points_in_front(c2d2d, k_inv, rs2, t_proposed, inv_row2)
    s_r1_t, s_r2_t = counts[:, 0], counts[:, 1]
    s_r1_mt, s_r2_mt = counts[:, 2], counts[:, 3]

    r = jnp.where((s_r1_t + s_r1_mt > s_r2_t + s_r2_mt)[:, None, None],
                  r_1, r_2)
    t = jnp.where((s_r1_t + s_r2_t > s_r1_mt + s_r2_mt)[:, None],
                  t_proposed, -t_proposed)

    tf_ab = jnp.tile(jnp.eye(4, dtype=jnp.float32), (B, 1, 1))
    tf_ab = tf_ab.at[:, :3, :3].set(r)
    tf_ab = tf_ab.at[:, :3, 3].set(
        t / jnp.sqrt(jnp.sum(t ** 2, axis=-1, keepdims=True)))

    return {"essential_tf_ab": tf_ab,
            "essential_decompose_last_sv": last_svs}


if __name__ == "__main__":
    B, N = 2, 128
    key = jax.random.PRNGKey(0)
    k_e, k_c = jax.random.split(key)

    # deterministic "buffer" for the module: a simple pinhole intrinsics matrix
    k_matrix = jnp.array([[100.0, 0.0, 64.0],
                          [0.0, 100.0, 48.0],
                          [0.0, 0.0, 1.0]], dtype=jnp.float32)

    essential_raw = jax.random.normal(k_e, (B, 3, 3), dtype=jnp.float32)
    c2d2d = jax.random.uniform(k_c, (B, N, 4), dtype=jnp.float32,
                               minval=0.0, maxval=128.0)

    out = essential_to_pose({"essential_raw": essential_raw,
                             "c2d2d": c2d2d}, k_matrix)
    jax.block_until_ready(out["essential_tf_ab"])
    jax.block_until_ready(out["essential_decompose_last_sv"])

    assert out["essential_tf_ab"].shape == (B, 4, 4)
    assert out["essential_decompose_last_sv"].shape == (B,)
    print("KERNEL_OK")
</pallas_src>

<mosaic_0001>
module attributes {stable_mosaic.version = 11 : i64} {
  func.func @kernel(%arg0: i32, %arg1: i32, %arg2: memref<1x4x8x128xf32, #tpu.memory_space<vmem>>, %arg3: memref<1x9xf32, #tpu.memory_space<smem>>, %arg4: memref<2x18xf32, #tpu.memory_space<smem>>, %arg5: memref<2x3xf32, #tpu.memory_space<smem>>, %arg6: memref<2x8xf32, #tpu.memory_space<smem>>, %arg7: memref<2x4xi32, #tpu.memory_space<smem>>) attributes {dimension_semantics = [#tpu.dimension_semantics<arbitrary>, #tpu.dimension_semantics<arbitrary>], iteration_bounds = array<i64: 2, 1>, scalar_prefetch = 0 : i64, scratch_operands = 0 : i64, tpu.core_type = #tpu.core_type<tc>, window_params = [{transform_indices = @transform_0, window_bounds = array<i64: 1, 4, 8, 128>}, {transform_indices = @transform_1, window_bounds = array<i64: 1, 9>}, {transform_indices = @transform_2, window_bounds = array<i64: 2, 18>}, {transform_indices = @transform_3, window_bounds = array<i64: 2, 3>}, {transform_indices = @transform_4, window_bounds = array<i64: 2, 8>}, {transform_indices = @transform_5, window_bounds = array<i64: 2, 4>}]} {
    %c0_i32 = arith.constant 0 : i32
    %0 = arith.cmpi eq, %arg1, %c0_i32 : i32
    %1 = arith.extui %0 : i1 to i32
    %c0_i32_0 = arith.constant 0 : i32
    %2 = arith.cmpi ne, %1, %c0_i32_0 : i32
    scf.if %2 {
      %c0_i32_74 = arith.constant 0 : i32
      %422 = arith.index_cast %arg0 : i32 to index
      %c0_75 = arith.constant 0 : index
      %423 = memref.load %arg7[%422, %c0_75] : memref<2x4xi32, #tpu.memory_space<smem>>
      memref.store %c0_i32_74, %arg7[%422, %c0_75] : memref<2x4xi32, #tpu.memory_space<smem>>
      %c0_i32_76 = arith.constant 0 : i32
      %424 = arith.index_cast %arg0 : i32 to index
      %c1_77 = arith.constant 1 : index
      %425 = memref.load %arg7[%424, %c1_77] : memref<2x4xi32, #tpu.memory_space<smem>>
      memref.store %c0_i32_76, %arg7[%424, %c1_77] : memref<2x4xi32, #tpu.memory_space<smem>>
      %c0_i32_78 = arith.constant 0 : i32
      %426 = arith.index_cast %arg0 : i32 to index
      %c2_79 = arith.constant 2 : index
      %427 = memref.load %arg7[%426, %c2_79] : memref<2x4xi32, #tpu.memory_space<smem>>
      memref.store %c0_i32_78, %arg7[%426, %c2_79] : memref<2x4xi32, #tpu.memory_space<smem>>
      %c0_i32_80 = arith.constant 0 : i32
      %428 = arith.index_cast %arg0 : i32 to index
      %c3_81 = arith.constant 3 : index
      %429 = memref.load %arg7[%428, %c3_81] : memref<2x4xi32, #tpu.memory_space<smem>>
      memref.store %c0_i32_80, %arg7[%428, %c3_81] : memref<2x4xi32, #tpu.memory_space<smem>>
    } else {
    }
    %c0 = arith.constant 0 : index
    %c0_1 = arith.constant 0 : index
    %c0_2 = arith.constant 0 : index
    %c0_3 = arith.constant 0 : index
    %3 = vector.load %arg2[%c0, %c0_1, %c0_2, %c0_3] : memref<1x4x8x128xf32, #tpu.memory_space<vmem>>, vector<1x1x8x128xf32>
    %4 = vector.shape_cast %3 : vector<1x1x8x128xf32> to vector<8x128xf32>
    %c0_4 = arith.constant 0 : index
    %c1 = arith.constant 1 : index
    %c0_5 = arith.constant 0 : index
    %c0_6 = arith.constant 0 : index
    %5 = vector.load %arg2[%c0_4, %c1, %c0_5, %c0_6] : memref<1x4x8x128xf32, #tpu.memory_space<vmem>>, vector<1x1x8x128xf32>
    %6 = vector.shape_cast %5 : vector<1x1x8x128xf32> to vector<8x128xf32>
    %c0_7 = arith.constant 0 : index
    %c2 = arith.constant 2 : index
    %c0_8 = arith.constant 0 : index
    %c0_9 = arith.constant 0 : index
    %7 = vector.load %arg2[%c0_7, %c2, %c0_8, %c0_9] : memref<1x4x8x128xf32, #tpu.memory_space<vmem>>, vector<1x1x8x128xf32>
    %8 = vector.shape_cast %7 : vector<1x1x8x128xf32> to vector<8x128xf32>
    %c0_10 = arith.constant 0 : index
    %c3 = arith.constant 3 : index
    %c0_11 = arith.constant 0 : index
    %c0_12 = arith.constant 0 : index
    %9 = vector.load %arg2[%c0_10, %c3, %c0_11, %c0_12] : memref<1x4x8x128xf32, #tpu.memory_space<vmem>>, vector<1x1x8x128xf32>
    %10 = vector.shape_cast %9 : vector<1x1x8x128xf32> to vector<8x128xf32>
    %11 = tpu.iota {dimensions = array<i32: 0>} : vector<8x128xi32>
    %12 = tpu.iota {dimensions = array<i32: 1>} : vector<8x128xi32>
    %c1024_i32 = arith.constant 1024 : i32
    %13 = arith.muli %arg1, %c1024_i32 : i32
    %c128_i32 = arith.constant 128 : i32
    %14 = vector.broadcast %c128_i32 : i32 to vector<8x128xi32>
    %15 = arith.muli %11, %14 : vector<8x128xi32>
    %16 = vector.broadcast %13 : i32 to vector<8x128xi32>
    %17 = arith.addi %16, %15 : vector<8x128xi32>
    %18 = arith.addi %17, %12 : vector<8x128xi32>
    %c128_i32_13 = arith.constant 128 : i32
    %19 = vector.broadcast %c128_i32_13 : i32 to vector<8x128xi32>
    %20 = arith.cmpi slt, %18, %19 : vector<8x128xi32>
    %c0_14 = arith.constant 0 : index
    %c0_15 = arith.constant 0 : index
    %21 = memref.load %arg3[%c0_14, %c0_15] : memref<1x9xf32, #tpu.memory_space<smem>>
    %c0_16 = arith.constant 0 : index
    %c1_17 = arith.constant 1 : index
    %22 = memref.load %arg3[%c0_16, %c1_17] : memref<1x9xf32, #tpu.memory_space<smem>>
    %c0_18 = arith.constant 0 : index
    %c2_19 = arith.constant 2 : index
    %23 = memref.load %arg3[%c0_18, %c2_19] : memref<1x9xf32, #tpu.memory_space<smem>>
    %c0_20 = arith.constant 0 : index
    %c3_21 = arith.constant 3 : index
    %24 = memref.load %arg3[%c0_20, %c3_21] : memref<1x9xf32, #tpu.memory_space<smem>>
    %c0_22 = arith.constant 0 : index
    %c4 = arith.constant 4 : index
    %25 = memref.load %arg3[%c0_22, %c4] : memref<1x9xf32, #tpu.memory_space<smem>>
    %c0_23 = arith.constant 0 : index
    %c5 = arith.constant 5 : index
    %26 = memref.load %arg3[%c0_23, %c5] : memref<1x9xf32, #tpu.memory_space<smem>>
    %c0_24 = arith.constant 0 : index
    %c6 = arith.constant 6 : index
    %27 = memref.load %arg3[%c0_24, %c6] : memref<1x9xf32, #tpu.memory_space<smem>>
    %c0_25 = arith.constant 0 : index
    %c7 = arith.constant 7 : index
    %28 = memref.load %arg3[%c0_25, %c7] : memref<1x9xf32, #tpu.memory_space<smem>>
    %c0_26 = arith.constant 0 : index
    %c8 = arith.constant 8 : index
    %29 = memref.load %arg3[%c0_26, %c8] : memref<1x9xf32, #tpu.memory_space<smem>>
    %30 = vector.broadcast %21 : f32 to vector<8x128xf32>
    %31 = arith.mulf %30, %4 : vector<8x128xf32>
    %32 = vector.broadcast %22 : f32 to vector<8x128xf32>
    %33 = arith.mulf %32, %6 : vector<8x128xf32>
    %34 = arith.addf %31, %33 : vector<8x128xf32>
    %35 = vector.broadcast %23 : f32 to vector<8x128xf32>
    %36 = arith.addf %34, %35 : vector<8x128xf32>
    %37 = vector.broadcast %24 : f32 to vector<8x128xf32>
    %38 = arith.mulf %37, %4 : vector<8x128xf32>
    %39 = vector.broadcast %25 : f32 to vector<8x128xf32>
    %40 = arith.mulf %39, %6 : vector<8x128xf32>
    %41 = arith.addf %38, %40 : vector<8x128xf32>
    %42 = vector.broadcast %26 : f32 to vector<8x128xf32>
    %43 = arith.addf %41, %42 : vector<8x128xf32>
    %44 = vector.broadcast %27 : f32 to vector<8x128xf32>
    %45 = arith.mulf %44, %4 : vector<8x128xf32>
    %46 = vector.broadcast %28 : f32 to vector<8x128xf32>
    %47 = arith.mulf %46, %6 : vector<8x128xf32>
    %48 = arith.addf %45, %47 : vector<8x128xf32>
    %49 = vector.broadcast %29 : f32 to vector<8x128xf32>
    %50 = arith.addf %48, %49 : vector<8x128xf32>
    %51 = vector.broadcast %21 : f32 to vector<8x128xf32>
    %52 = arith.mulf %51, %8 : vector<8x128xf32>
    %53 = vector.broadcast %22 : f32 to vector<8x128xf32>
    %54 = arith.mulf %53, %10 : vector<8x128xf32>
    %55 = arith.addf %52, %54 : vector<8x128xf32>
    %56 = vector.broadcast %23 : f32 to vector<8x128xf32>
    %57 = arith.addf %55, %56 : vector<8x128xf32>
    %58 = vector.broadcast %24 : f32 to vector<8x128xf32>
    %59 = arith.mulf %58, %8 : vector<8x128xf32>
    %60 = vector.broadcast %25 : f32 to vector<8x128xf32>
    %61 = arith.mulf %60, %10 : vector<8x128xf32>
    %62 = arith.addf %59, %61 : vector<8x128xf32>
    %63 = vector.broadcast %26 : f32 to vector<8x128xf32>
    %64 = arith.addf %62, %63 : vector<8x128xf32>
    %65 = vector.broadcast %27 : f32 to vector<8x128xf32>
    %66 = arith.mulf %65, %8 : vector<8x128xf32>
    %67 = vector.broadcast %28 : f32 to vector<8x128xf32>
    %68 = arith.mulf %67, %10 : vector<8x128xf32>
    %69 = arith.addf %66, %68 : vector<8x128xf32>
    %70 = vector.broadcast %29 : f32 to vector<8x128xf32>
    %71 = arith.addf %69, %70 : vector<8x128xf32>
    %72 = arith.index_cast %arg0 : i32 to index
    %c0_27 = arith.constant 0 : index
    %73 = memref.load %arg5[%72, %c0_27] : memref<2x3xf32, #tpu.memory_space<smem>>
    %74 = arith.index_cast %arg0 : i32 to index
    %c1_28 = arith.constant 1 : index
    %75 = memref.load %arg5[%74, %c1_28] : memref<2x3xf32, #tpu.memory_space<smem>>
    %76 = arith.index_cast %arg0 : i32 to index
    %c2_29 = arith.constant 2 : index
    %77 = memref.load %arg5[%76, %c2_29] : memref<2x3xf32, #tpu.memory_space<smem>>
    %78 = arith.index_cast %arg0 : i32 to index
    %c0_30 = arith.constant 0 : index
    %79 = memref.load %arg4[%78, %c0_30] : memref<2x18xf32, #tpu.memory_space<smem>>
    %80 = arith.index_cast %arg0 : i32 to index
    %c1_31 = arith.constant 1 : index
    %81 = memref.load %arg4[%80, %c1_31] : memref<2x18xf32, #tpu.memory_space<smem>>
    %82 = arith.index_cast %arg0 : i32 to index
    %c2_32 = arith.constant 2 : index
    %83 = memref.load %arg4[%82, %c2_32] : memref<2x18xf32, #tpu.memory_space<smem>>
    %84 = arith.index_cast %arg0 : i32 to index
    %c3_33 = arith.constant 3 : index
    %85 = memref.load %arg4[%84, %c3_33] : memref<2x18xf32, #tpu.memory_space<smem>>
    %86 = arith.index_cast %arg0 : i32 to index
    %c4_34 = arith.constant 4 : index
    %87 = memref.load %arg4[%86, %c4_34] : memref<2x18xf32, #tpu.memory_space<smem>>
    %88 = arith.index_cast %arg0 : i32 to index
    %c5_35 = arith.constant 5 : index
    %89 = memref.load %arg4[%88, %c5_35] : memref<2x18xf32, #tpu.memory_space<smem>>
    %90 = arith.index_cast %arg0 : i32 to index
    %c6_36 = arith.constant 6 : index
    %91 = memref.load %arg4[%90, %c6_36] : memref<2x18xf32, #tpu.memory_space<smem>>
    %92 = arith.index_cast %arg0 : i32 to index
    %c7_37 = arith.constant 7 : index
    %93 = memref.load %arg4[%92, %c7_37] : memref<2x18xf32, #tpu.memory_space<smem>>
    %94 = arith.index_cast %arg0 : i32 to index
    %c8_38 = arith.constant 8 : index
    %95 = memref.load %arg4[%94, %c8_38] : memref<2x18xf32, #tpu.memory_space<smem>>
    %96 = arith.index_cast %arg0 : i32 to index
    %c0_39 = arith.constant 0 : index
    %97 = memref.load %arg6[%96, %c0_39] : memref<2x8xf32, #tpu.memory_space<smem>>
    %98 = arith.index_cast %arg0 : i32 to index
    %c1_40 = arith.constant 1 : index
    %99 = memref.load %arg6[%98, %c1_40] : memref<2x8xf32, #tpu.memory_space<smem>>
    %100 = arith.index_cast %arg0 : i32 to index
    %c2_41 = arith.constant 2 : index
    %101 = memref.load %arg6[%100, %c2_41] : memref<2x8xf32, #tpu.memory_space<smem>>
    %102 = arith.index_cast %arg0 : i32 to index
    %c3_42 = arith.constant 3 : index
    %103 = memref.load %arg6[%102, %c3_42] : memref<2x8xf32, #tpu.memory_space<smem>>
    %104 = vector.broadcast %79 : f32 to vector<8x128xf32>
    %105 = arith.mulf %104, %57 : vector<8x128xf32>
    %106 = vector.broadcast %81 : f32 to vector<8x128xf32>
    %107 = arith.mulf %106, %64 : vector<8x128xf32>
    %108 = arith.addf %105, %107 : vector<8x128xf32>
    %109 = vector.broadcast %83 : f32 to vector<8x128xf32>
    %110 = arith.mulf %109, %71 : vector<8x128xf32>
    %111 = arith.addf %108, %110 : vector<8x128xf32>
    %112 = vector.broadcast %85 : f32 to vector<8x128xf32>
    %113 = arith.mulf %112, %57 : vector<8x128xf32>
    %114 = vector.broadcast %87 : f32 to vector<8x128xf32>
    %115 = arith.mulf %114, %64 : vector<8x128xf32>
    %116 = arith.addf %113, %115 : vector<8x128xf32>
    %117 = vector.broadcast %89 : f32 to vector<8x128xf32>
    %118 = arith.mulf %117, %71 : vector<8x128xf32>
    %119 = arith.addf %116, %118 : vector<8x128xf32>
    %120 = vector.broadcast %91 : f32 to vector<8x128xf32>
    %121 = arith.mulf %120, %57 : vector<8x128xf32>
    %122 = vector.broadcast %93 : f32 to vector<8x128xf32>
    %123 = arith.mulf %122, %64 : vector<8x128xf32>
    %124 = arith.addf %121, %123 : vector<8x128xf32>
    %125 = vector.broadcast %95 : f32 to vector<8x128xf32>
    %126 = arith.mulf %125, %71 : vector<8x128xf32>
    %127 = arith.addf %124, %126 : vector<8x128xf32>
    %128 = arith.mulf %119, %50 : vector<8x128xf32>
    %129 = arith.mulf %127, %43 : vector<8x128xf32>
    %130 = arith.subf %128, %129 : vector<8x128xf32>
    %131 = arith.mulf %127, %36 : vector<8x128xf32>
    %132 = arith.mulf %111, %50 : vector<8x128xf32>
    %133 = arith.subf %131, %132 : vector<8x128xf32>
    %134 = arith.mulf %111, %43 : vector<8x128xf32>
    %135 = arith.mulf %119, %36 : vector<8x128xf32>
    %136 = arith.subf %134, %135 : vector<8x128xf32>
    %137 = arith.mulf %43, %136 : vector<8x128xf32>
    %138 = arith.mulf %50, %133 : vector<8x128xf32>
    %139 = arith.subf %137, %138 : vector<8x128xf32>
    %140 = arith.mulf %50, %130 : vector<8x128xf32>
    %141 = arith.mulf %36, %136 : vector<8x128xf32>
    %142 = arith.subf %140, %141 : vector<8x128xf32>
    %143 = arith.mulf %36, %133 : vector<8x128xf32>
    %144 = arith.mulf %43, %130 : vector<8x128xf32>
    %145 = arith.subf %143, %144 : vector<8x128xf32>
    %146 = arith.mulf %133, %127 : vector<8x128xf32>
    %147 = arith.mulf %136, %119 : vector<8x128xf32>
    %148 = arith.subf %146, %147 : vector<8x128xf32>
    %149 = arith.mulf %136, %111 : vector<8x128xf32>
    %150 = arith.mulf %130, %127 : vector<8x128xf32>
    %151 = arith.subf %149, %150 : vector<8x128xf32>
    %152 = arith.mulf %130, %119 : vector<8x128xf32>
    %153 = arith.mulf %133, %111 : vector<8x128xf32>
    %154 = arith.subf %152, %153 : vector<8x128xf32>
    %155 = vector.broadcast %73 : f32 to vector<8x128xf32>
    %156 = arith.mulf %155, %148 : vector<8x128xf32>
    %157 = vector.broadcast %75 : f32 to vector<8x128xf32>
    %158 = arith.mulf %157, %151 : vector<8x128xf32>
    %159 = arith.addf %156, %158 : vector<8x128xf32>
    %160 = vector.broadcast %77 : f32 to vector<8x128xf32>
    %161 = arith.mulf %160, %154 : vector<8x128xf32>
    %162 = arith.addf %159, %161 : vector<8x128xf32>
    %163 = arith.mulf %36, %148 : vector<8x128xf32>
    %164 = arith.mulf %43, %151 : vector<8x128xf32>
    %165 = arith.addf %163, %164 : vector<8x128xf32>
    %166 = arith.mulf %50, %154 : vector<8x128xf32>
    %167 = arith.addf %165, %166 : vector<8x128xf32>
    %168 = tpu.reciprocal %167 {approx = true} : vector<8x128xf32> -> vector<8x128xf32>
    %169 = arith.mulf %162, %168 : vector<8x128xf32>
    %170 = arith.mulf %169, %36 : vector<8x128xf32>
    %171 = arith.mulf %169, %43 : vector<8x128xf32>
    %172 = arith.mulf %169, %50 : vector<8x128xf32>
    %173 = vector.broadcast %73 : f32 to vector<8x128xf32>
    %174 = arith.mulf %173, %139 : vector<8x128xf32>
    %175 = vector.broadcast %75 : f32 to vector<8x128xf32>
    %176 = arith.mulf %175, %142 : vector<8x128xf32>
    %177 = arith.addf %174, %176 : vector<8x128xf32>
    %178 = vector.broadcast %77 : f32 to vector<8x128xf32>
    %179 = arith.mulf %178, %145 : vector<8x128xf32>
    %180 = arith.addf %177, %179 : vector<8x128xf32>
    %cst = arith.constant 0.000000e+00 : f32
    %181 = vector.broadcast %cst : f32 to vector<8x128xf32>
    %182 = arith.subf %181, %180 : vector<8x128xf32>
    %183 = arith.mulf %111, %139 : vector<8x128xf32>
    %184 = arith.mulf %119, %142 : vector<8x128xf32>
    %185 = arith.addf %183, %184 : vector<8x128xf32>
    %186 = arith.mulf %127, %145 : vector<8x128xf32>
    %187 = arith.addf %185, %186 : vector<8x128xf32>
    %188 = tpu.reciprocal %187 {approx = true} : vector<8x128xf32> -> vector<8x128xf32>
    %189 = arith.mulf %182, %188 : vector<8x128xf32>
    %190 = arith.mulf %189, %111 : vector<8x128xf32>
    %191 = vector.broadcast %73 : f32 to vector<8x128xf32>
    %192 = arith.addf %191, %190 : vector<8x128xf32>
    %193 = arith.mulf %189, %119 : vector<8x128xf32>
    %194 = vector.broadcast %75 : f32 to vector<8x128xf32>
    %195 = arith.addf %194, %193 : vector<8x128xf32>
    %196 = arith.mulf %189, %127 : vector<8x128xf32>
    %197 = vector.broadcast %77 : f32 to vector<8x128xf32>
    %198 = arith.addf %197, %196 : vector<8x128xf32>
    %199 = arith.addf %170, %192 : vector<8x128xf32>
    %cst_43 = arith.constant 5.000000e-01 : f32
    %200 = vector.broadcast %cst_43 : f32 to vector<8x128xf32>
    %201 = arith.mulf %199, %200 : vector<8x128xf32>
    %202 = arith.addf %171, %195 : vector<8x128xf32>
    %cst_44 = arith.constant 5.000000e-01 : f32
    %203 = vector.broadcast %cst_44 : f32 to vector<8x128xf32>
    %204 = arith.mulf %202, %203 : vector<8x128xf32>
    %205 = arith.addf %172, %198 : vector<8x128xf32>
    %cst_45 = arith.constant 5.000000e-01 : f32
    %206 = vector.broadcast %cst_45 : f32 to vector<8x128xf32>
    %207 = arith.mulf %205, %206 : vector<8x128xf32>
    %208 = vector.broadcast %97 : f32 to vector<8x128xf32>
    %209 = arith.mulf %208, %201 : vector<8x128xf32>
    %210 = vector.broadcast %99 : f32 to vector<8x128xf32>
    %211 = arith.mulf %210, %204 : vector<8x128xf32>
    %212 = arith.addf %209, %211 : vector<8x128xf32>
    %213 = vector.broadcast %101 : f32 to vector<8x128xf32>
    %214 = arith.mulf %213, %207 : vector<8x128xf32>
    %215 = arith.addf %212, %214 : vector<8x128xf32>
    %216 = vector.broadcast %103 : f32 to vector<8x128xf32>
    %217 = arith.addf %215, %216 : vector<8x128xf32>
    %cst_46 = arith.constant 0.000000e+00 : f32
    %218 = vector.broadcast %cst_46 : f32 to vector<8x128xf32>
    %219 = arith.cmpf ogt, %207, %218 : vector<8x128xf32>
    %cst_47 = arith.constant 0.000000e+00 : f32
    %220 = vector.broadcast %cst_47 : f32 to vector<8x128xf32>
    %221 = arith.cmpf ogt, %217, %220 : vector<8x128xf32>
    %222 = arith.andi %219, %221 : vector<8x128xi1>
    %223 = arith.andi %222, %20 : vector<8x128xi1>
    %cst_48 = arith.constant 0.000000e+00 : f32
    %224 = vector.broadcast %cst_48 : f32 to vector<8x128xf32>
    %225 = arith.cmpf olt, %207, %224 : vector<8x128xf32>
    %cst_49 = arith.constant 0.000000e+00 : f32
    %226 = vector.broadcast %cst_49 : f32 to vector<8x128xf32>
    %227 = arith.cmpf olt, %217, %226 : vector<8x128xf32>
    %228 = arith.andi %225, %227 : vector<8x128xi1>
    %229 = arith.andi %228, %20 : vector<8x128xi1>
    %230 = arith.extui %223 : vector<8x128xi1> to vector<8x128xi32>
    %231 = vector.shape_cast %230 : vector<8x128xi32> to vector<1x8x128xi32>
    %cst_50 = arith.constant dense<0> : vector<1xi32>
    %232 = vector.multi_reduction <add>, %231, %cst_50 [1, 2] : vector<1x8x128xi32> to vector<1xi32>
    %233 = vector.shape_cast %232 : vector<1xi32> to vector<1x1x1xi32>
    %234 = vector.extract %233[0, 0, 0] : i32 from vector<1x1x1xi32>
    %235 = arith.extui %229 : vector<8x128xi1> to vector<8x128xi32>
    %236 = vector.shape_cast %235 : vector<8x128xi32> to vector<1x8x128xi32>
    %cst_51 = arith.constant dense<0> : vector<1xi32>
    %237 = vector.multi_reduction <add>, %236, %cst_51 [1, 2] : vector<1x8x128xi32> to vector<1xi32>
    %238 = vector.shape_cast %237 : vector<1xi32> to vector<1x1x1xi32>
    %239 = vector.extract %238[0, 0, 0] : i32 from vector<1x1x1xi32>
    %240 = arith.index_cast %arg0 : i32 to index
    %c0_52 = arith.constant 0 : index
    %241 = memref.load %arg7[%240, %c0_52] : memref<2x4xi32, #tpu.memory_space<smem>>
    %242 = arith.addi %241, %234 : i32
    %243 = arith.index_cast %arg0 : i32 to index
    %c0_53 = arith.constant 0 : index
    %244 = memref.load %arg7[%243, %c0_53] : memref<2x4xi32, #tpu.memory_space<smem>>
    memref.store %242, %arg7[%243, %c0_53] : memref<2x4xi32, #tpu.memory_space<smem>>
    %245 = arith.index_cast %arg0 : i32 to index
    %c2_54 = arith.constant 2 : index
    %246 = memref.load %arg7[%245, %c2_54] : memref<2x4xi32, #tpu.memory_space<smem>>
    %247 = arith.addi %246, %239 : i32
    %248 = arith.index_cast %arg0 : i32 to index
    %c2_55 = arith.constant 2 : index
    %249 = memref.load %arg7[%248, %c2_55] : memref<2x4xi32, #tpu.memory_space<smem>>
    memref.store %247, %arg7[%248, %c2_55] : memref<2x4xi32, #tpu.memory_space<smem>>
    %250 = arith.index_cast %arg0 : i32 to index
    %c9 = arith.constant 9 : index
    %251 = memref.load %arg4[%250, %c9] : memref<2x18xf32, #tpu.memory_space<smem>>
    %252 = arith.index_cast %arg0 : i32 to index
    %c10 = arith.constant 10 : index
    %253 = memref.load %arg4[%252, %c10] : memref<2x18xf32, #tpu.memory_space<smem>>
    %254 = arith.index_cast %arg0 : i32 to index
    %c11 = arith.constant 11 : index
    %255 = memref.load %arg4[%254, %c11] : memref<2x18xf32, #tpu.memory_space<smem>>
    %256 = arith.index_cast %arg0 : i32 to index
    %c12 = arith.constant 12 : index
    %257 = memref.load %arg4[%256, %c12] : memref<2x18xf32, #tpu.memory_space<smem>>
    %258 = arith.index_cast %arg0 : i32 to index
    %c13 = arith.constant 13 : index
    %259 = memref.load %arg4[%258, %c13] : memref<2x18xf32, #tpu.memory_space<smem>>
    %260 = arith.index_cast %arg0 : i32 to index
    %c14 = arith.constant 14 : index
    %261 = memref.load %arg4[%260, %c14] : memref<2x18xf32, #tpu.memory_space<smem>>
    %262 = arith.index_cast %arg0 : i32 to index
    %c15 = arith.constant 15 : index
    %263 = memref.load %arg4[%262, %c15] : memref<2x18xf32, #tpu.memory_space<smem>>
    %264 = arith.index_cast %arg0 : i32 to index
    %c16 = arith.constant 16 : index
    %265 = memref.load %arg4[%264, %c16] : memref<2x18xf32, #tpu.memory_space<smem>>
    %266 = arith.index_cast %arg0 : i32 to index
    %c17 = arith.constant 17 : index
    %267 = memref.load %arg4[%266, %c17] : memref<2x18xf32, #tpu.memory_space<smem>>
    %268 = arith.index_cast %arg0 : i32 to index
    %c4_56 = arith.constant 4 : index
    %269 = memref.load %arg6[%268, %c4_56] : memref<2x8xf32, #tpu.memory_space<smem>>
    %270 = arith.index_cast %arg0 : i32 to index
    %c5_57 = arith.constant 5 : index
    %271 = memref.load %arg6[%270, %c5_57] : memref<2x8xf32, #tpu.memory_space<smem>>
    %272 = arith.index_cast %arg0 : i32 to index
    %c6_58 = arith.constant 6 : index
    %273 = memref.load %arg6[%272, %c6_58] : memref<2x8xf32, #tpu.memory_space<smem>>
    %274 = arith.index_cast %arg0 : i32 to index
    %c7_59 = arith.constant 7 : index
    %275 = memref.load %arg6[%274, %c7_59] : memref<2x8xf32, #tpu.memory_space<smem>>
    %276 = vector.broadcast %251 : f32 to vector<8x128xf32>
    %277 = arith.mulf %276, %57 : vector<8x128xf32>
    %278 = vector.broadcast %253 : f32 to vector<8x128xf32>
    %279 = arith.mulf %278, %64 : vector<8x128xf32>
    %280 = arith.addf %277, %279 : vector<8x128xf32>
    %281 = vector.broadcast %255 : f32 to vector<8x128xf32>
    %282 = arith.mulf %281, %71 : vector<8x128xf32>
    %283 = arith.addf %280, %282 : vector<8x128xf32>
    %284 = vector.broadcast %257 : f32 to vector<8x128xf32>
    %285 = arith.mulf %284, %57 : vector<8x128xf32>
    %286 = vector.broadcast %259 : f32 to vector<8x128xf32>
    %287 = arith.mulf %286, %64 : vector<8x128xf32>
    %288 = arith.addf %285, %287 : vector<8x128xf32>
    %289 = vector.broadcast %261 : f32 to vector<8x128xf32>
    %290 = arith.mulf %289, %71 : vector<8x128xf32>
    %291 = arith.addf %288, %290 : vector<8x128xf32>
    %292 = vector.broadcast %263 : f32 to vector<8x128xf32>
    %293 = arith.mulf %292, %57 : vector<8x128xf32>
    %294 = vector.broadcast %265 : f32 to vector<8x128xf32>
    %295 = arith.mulf %294, %64 : vector<8x128xf32>
    %296 = arith.addf %293, %295 : vector<8x128xf32>
    %297 = vector.broadcast %267 : f32 to vector<8x128xf32>
    %298 = arith.mulf %297, %71 : vector<8x128xf32>
    %299 = arith.addf %296, %298 : vector<8x128xf32>
    %300 = arith.mulf %291, %50 : vector<8x128xf32>
    %301 = arith.mulf %299, %43 : vector<8x128xf32>
    %302 = arith.subf %300, %301 : vector<8x128xf32>
    %303 = arith.mulf %299, %36 : vector<8x128xf32>
    %304 = arith.mulf %283, %50 : vector<8x128xf32>
    %305 = arith.subf %303, %304 : vector<8x128xf32>
    %306 = arith.mulf %283, %43 : vector<8x128xf32>
    %307 = arith.mulf %291, %36 : vector<8x128xf32>
    %308 = arith.subf %306, %307 : vector<8x128xf32>
    %309 = arith.mulf %43, %308 : vector<8x128xf32>
    %310 = arith.mulf %50, %305 : vector<8x128xf32>
    %311 = arith.subf %309, %310 : vector<8x128xf32>
    %312 = arith.mulf %50, %302 : vector<8x128xf32>
    %313 = arith.mulf %36, %308 : vector<8x128xf32>
    %314 = arith.subf %312, %313 : vector<8x128xf32>
    %315 = arith.mulf %36, %305 : vector<8x128xf32>
    %316 = arith.mulf %43, %302 : vector<8x128xf32>
    %317 = arith.subf %315, %316 : vector<8x128xf32>
    %318 = arith.mulf %305, %299 : vector<8x128xf32>
    %319 = arith.mulf %308, %291 : vector<8x128xf32>
    %320 = arith.subf %318, %319 : vector<8x128xf32>
    %321 = arith.mulf %308, %283 : vector<8x128xf32>
    %322 = arith.mulf %302, %299 : vector<8x128xf32>
    %323 = arith.subf %321, %322 : vector<8x128xf32>
    %324 = arith.mulf %302, %291 : vector<8x128xf32>
    %325 = arith.mulf %305, %283 : vector<8x128xf32>
    %326 = arith.subf %324, %325 : vector<8x128xf32>
    %327 = vector.broadcast %73 : f32 to vector<8x128xf32>
    %328 = arith.mulf %327, %320 : vector<8x128xf32>
    %329 = vector.broadcast %75 : f32 to vector<8x128xf32>
    %330 = arith.mulf %329, %323 : vector<8x128xf32>
    %331 = arith.addf %328, %330 : vector<8x128xf32>
    %332 = vector.broadcast %77 : f32 to vector<8x128xf32>
    %333 = arith.mulf %332, %326 : vector<8x128xf32>
    %334 = arith.addf %331, %333 : vector<8x128xf32>
    %335 = arith.mulf %36, %320 : vector<8x128xf32>
    %336 = arith.mulf %43, %323 : vector<8x128xf32>
    %337 = arith.addf %335, %336 : vector<8x128xf32>
    %338 = arith.mulf %50, %326 : vector<8x128xf32>
    %339 = arith.addf %337, %338 : vector<8x128xf32>
    %340 = tpu.reciprocal %339 {approx = true} : vector<8x128xf32> -> vector<8x128xf32>
    %341 = arith.mulf %334, %340 : vector<8x128xf32>
    %342 = arith.mulf %341, %36 : vector<8x128xf32>
    %343 = arith.mulf %341, %43 : vector<8x128xf32>
    %344 = arith.mulf %341, %50 : vector<8x128xf32>
    %345 = vector.broadcast %73 : f32 to vector<8x128xf32>
    %346 = arith.mulf %345, %311 : vector<8x128xf32>
    %347 = vector.broadcast %75 : f32 to vector<8x128xf32>
    %348 = arith.mulf %347, %314 : vector<8x128xf32>
    %349 = arith.addf %346, %348 : vector<8x128xf32>
    %350 = vector.broadcast %77 : f32 to vector<8x128xf32>
    %351 = arith.mulf %350, %317 : vector<8x128xf32>
    %352 = arith.addf %349, %351 : vector<8x128xf32>
    %cst_60 = arith.constant 0.000000e+00 : f32
    %353 = vector.broadcast %cst_60 : f32 to vector<8x128xf32>
    %354 = arith.subf %353, %352 : vector<8x128xf32>
    %355 = arith.mulf %283, %311 : vector<8x128xf32>
    %356 = arith.mulf %291, %314 : vector<8x128xf32>
    %357 = arith.addf %355, %356 : vector<8x128xf32>
    %358 = arith.mulf %299, %317 : vector<8x128xf32>
    %359 = arith.addf %357, %358 : vector<8x128xf32>
    %360 = tpu.reciprocal %359 {approx = true} : vector<8x128xf32> -> vector<8x128xf32>
    %361 = arith.mulf %354, %360 : vector<8x128xf32>
    %362 = arith.mulf %361, %283 : vector<8x128xf32>
    %363 = vector.broadcast %73 : f32 to vector<8x128xf32>
    %364 = arith.addf %363, %362 : vector<8x128xf32>
    %365 = arith.mulf %361, %291 : vector<8x128xf32>
    %366 = vector.broadcast %75 : f32 to vector<8x128xf32>
    %367 = arith.addf %366, %365 : vector<8x128xf32>
    %368 = arith.mulf %361, %299 : vector<8x128xf32>
    %369 = vector.broadcast %77 : f32 to vector<8x128xf32>
    %370 = arith.addf %369, %368 : vector<8x128xf32>
    %371 = arith.addf %342, %364 : vector<8x128xf32>
    %cst_61 = arith.constant 5.000000e-01 : f32
    %372 = vector.broadcast %cst_61 : f32 to vector<8x128xf32>
    %373 = arith.mulf %371, %372 : vector<8x128xf32>
    %374 = arith.addf %343, %367 : vector<8x128xf32>
    %cst_62 = arith.constant 5.000000e-01 : f32
    %375 = vector.broadcast %cst_62 : f32 to vector<8x128xf32>
    %376 = arith.mulf %374, %375 : vector<8x128xf32>
    %377 = arith.addf %344, %370 : vector<8x128xf32>
    %cst_63 = arith.constant 5.000000e-01 : f32
    %378 = vector.broadcast %cst_63 : f32 to vector<8x128xf32>
    %379 = arith.mulf %377, %378 : vector<8x128xf32>
    %380 = vector.broadcast %269 : f32 to vector<8x128xf32>
    %381 = arith.mulf %380, %373 : vector<8x128xf32>
    %382 = vector.broadcast %271 : f32 to vector<8x128xf32>
    %383 = arith.mulf %382, %376 : vector<8x128xf32>
    %384 = arith.addf %381, %383 : vector<8x128xf32>
    %385 = vector.broadcast %273 : f32 to vector<8x128xf32>
    %386 = arith.mulf %385, %379 : vector<8x128xf32>
    %387 = arith.addf %384, %386 : vector<8x128xf32>
    %388 = vector.broadcast %275 : f32 to vector<8x128xf32>
    %389 = arith.addf %387, %388 : vector<8x128xf32>
    %cst_64 = arith.constant 0.000000e+00 : f32
    %390 = vector.broadcast %cst_64 : f32 to vector<8x128xf32>
    %391 = arith.cmpf ogt, %379, %390 : vector<8x128xf32>
    %cst_65 = arith.constant 0.000000e+00 : f32
    %392 = vector.broadcast %cst_65 : f32 to vector<8x128xf32>
    %393 = arith.cmpf ogt, %389, %392 : vector<8x128xf32>
    %394 = arith.andi %391, %393 : vector<8x128xi1>
    %395 = arith.andi %394, %20 : vector<8x128xi1>
    %cst_66 = arith.constant 0.000000e+00 : f32
    %396 = vector.broadcast %cst_66 : f32 to vector<8x128xf32>
    %397 = arith.cmpf olt, %379, %396 : vector<8x128xf32>
    %cst_67 = arith.constant 0.000000e+00 : f32
    %398 = vector.broadcast %cst_67 : f32 to vector<8x128xf32>
    %399 = arith.cmpf olt, %389, %398 : vector<8x128xf32>
    %400 = arith.andi %397, %399 : vector<8x128xi1>
    %401 = arith.andi %400, %20 : vector<8x128xi1>
    %402 = arith.extui %395 : vector<8x128xi1> to vector<8x128xi32>
    %403 = vector.shape_cast %402 : vector<8x128xi32> to vector<1x8x128xi32>
    %cst_68 = arith.constant dense<0> : vector<1xi32>
    %404 = vector.multi_reduction <add>, %403, %cst_68 [1, 2] : vector<1x8x128xi32> to vector<1xi32>
    %405 = vector.shape_cast %404 : vector<1xi32> to vector<1x1x1xi32>
    %406 = vector.extract %405[0, 0, 0] : i32 from vector<1x1x1xi32>
    %407 = arith.extui %401 : vector<8x128xi1> to vector<8x128xi32>
    %408 = vector.shape_cast %407 : vector<8x128xi32> to vector<1x8x128xi32>
    %cst_69 = arith.constant dense<0> : vector<1xi32>
    %409 = vector.multi_reduction <add>, %408, %cst_69 [1, 2] : vector<1x8x128xi32> to vector<1xi32>
    %410 = vector.shape_cast %409 : vector<1xi32> to vector<1x1x1xi32>
    %411 = vector.extract %410[0, 0, 0] : i32 from vector<1x1x1xi32>
    %412 = arith.index_cast %arg0 : i32 to index
    %c1_70 = arith.constant 1 : index
    %413 = memref.load %arg7[%412, %c1_70] : memref<2x4xi32, #tpu.memory_space<smem>>
    %414 = arith.addi %413, %406 : i32
    %415 = arith.index_cast %arg0 : i32 to index
    %c1_71 = arith.constant 1 : index
    %416 = memref.load %arg7[%415, %c1_71] : memref<2x4xi32, #tpu.memory_space<smem>>
    memref.store %414, %arg7[%415, %c1_71] : memref<2x4xi32, #tpu.memory_space<smem>>
    %417 = arith.index_cast %arg0 : i32 to index
    %c3_72 = arith.constant 3 : index
    %418 = memref.load %arg7[%417, %c3_72] : memref<2x4xi32, #tpu.memory_space<smem>>
    %419 = arith.addi %418, %411 : i32
    %420 = arith.index_cast %arg0 : i32 to index
    %c3_73 = arith.constant 3 : index
    %421 = memref.load %arg7[%420, %c3_73] : memref<2x4xi32, #tpu.memory_space<smem>>
    memref.store %419, %arg7[%420, %c3_73] : memref<2x4xi32, #tpu.memory_space<smem>>
    return
  }
  func.func @transform_0(%arg0: i32, %arg1: i32) -> (i32, i32, i32, i32) {
    %c0_i32 = arith.constant 0 : i32
    %c0_i32_0 = arith.constant 0 : i32
    %c0_i32_1 = arith.constant 0 : i32
    return %arg0, %c0_i32, %arg1, %c0_i32_0 : i32, i32, i32, i32
  }
  func.func @transform_1(%arg0: i32, %arg1: i32) -> (i32, i32) {
    %c0_i32 = arith.constant 0 : i32
    %c0_i32_0 = arith.constant 0 : i32
    %c0_i32_1 = arith.constant 0 : i32
    return %c0_i32, %c0_i32_0 : i32, i32
  }
  func.func @transform_2(%arg0: i32, %arg1: i32) -> (i32, i32) {
    %c0_i32 = arith.constant 0 : i32
    %c0_i32_0 = arith.constant 0 : i32
    %c0_i32_1 = arith.constant 0 : i32
    return %c0_i32, %c0_i32_0 : i32, i32
  }
  func.func @transform_3(%arg0: i32, %arg1: i32) -> (i32, i32) {
    %c0_i32 = arith.constant 0 : i32
    %c0_i32_0 = arith.constant 0 : i32
    %c0_i32_1 = arith.constant 0 : i32
    return %c0_i32, %c0_i32_0 : i32, i32
  }
  func.func @transform_4(%arg0: i32, %arg1: i32) -> (i32, i32) {
    %c0_i32 = arith.constant 0 : i32
    %c0_i32_0 = arith.constant 0 : i32
    %c0_i32_1 = arith.constant 0 : i32
    return %c0_i32, %c0_i32_0 : i32, i32
  }
  func.func @transform_5(%arg0: i32, %arg1: i32) -> (i32, i32) {
    %c0_i32 = arith.constant 0 : i32
    %c0_i32_0 = arith.constant 0 : i32
    %c0_i32_1 = arith.constant 0 : i32
    return %c0_i32, %c0_i32_0 : i32, i32
  }
}

</mosaic_0001>

<llo_original>
// kernel: tpu_custom_call.1
$region0: #{tpu_custom_call.1}
  #allocation0 [shape = 'u32[]', space=smem, size = 0x4, offset = 0x4, fixed_abs, tag = 'smem constant byte address 0x4 - core index']
  #allocation1 [shape = 'u32[144,128]{1,0:T(1,128)}', space=vmem, size = 0x12000, scoped, tag = 'internal scratch']
  %s0 = inlined_call_operand.hbm [shape: f32[2,4,8,128], index: 0, kind: input, shape index: {}]
  %s1 = inlined_call_operand.vmem [shape: f32[1,9], index: 1, kind: input, shape index: {}]
  %s2 = inlined_call_operand.vmem [shape: f32[2,18], index: 2, kind: input, shape index: {}]
  %s3 = inlined_call_operand.vmem [shape: f32[2,3], index: 3, kind: input, shape index: {}]
  %s4 = inlined_call_operand.vmem [shape: f32[2,8], index: 4, kind: input, shape index: {}]
  %s5 = inlined_call_operand.hbm [shape: s32[2,4], index: 5, kind: output, shape index: {}]
  %s6 = sld [smem:[#allocation0]]
  $region77: #{tpu_custom_call.1} parent=0
    _
  %s8 = ssub.s32 1, %s6
  %s9 = scalar_select 0, %s8, %s6
  $region1: #{tpu_custom_call.1} parent=0
    #allocation2 [shape = 'u8[32768]{0}', space=vmem, size = 0x8000, scoped, tag = 'input window, operand 0']
    #allocation3 [shape = 's32[2]{0}', space=sflag, size = 0x8, scoped, tag = 'scoped memory for tpu_custom_call.1']
    #allocation4 [shape = 's32[2]{0}', space=sflag, size = 0x8, scoped, tag = 'scoped memory for tpu_custom_call.1']
    #allocation5 [shape = 's32[2]{0}', space=sflag, size = 0x8, scoped, tag = 'scoped memory for tpu_custom_call.1']
    #allocation6 [shape = 'u8[512]{0}', space=smem, size = 0x200, scoped, tag = 'input window, operand 1, single buffered']
    #allocation7 [shape = 'u8[1024]{0}', space=smem, size = 0x400, scoped, tag = 'input window, operand 2, single buffered']
    #allocation8 [shape = 's32[1]{0}', space=sflag, size = 0x4, scoped, tag = 'scoped memory for tpu_custom_call.1']
    #allocation9 [shape = 'u8[1024]{0}', space=smem, size = 0x400, scoped, tag = 'input window, operand 3, single buffered']
    #allocation10 [shape = 'u8[1024]{0}', space=smem, size = 0x400, scoped, tag = 'input window, operand 4, single buffered']
    #allocation11 [shape = 's32[1]{0}', space=sflag, size = 0x4, scoped, tag = 'scoped memory for tpu_custom_call.1']
    #allocation12 [shape = 'u8[1024]{0}', space=smem, size = 0x400, scoped, tag = 'output window, operand 0, single buffered']
    %10 = vsyncpa [#allocation3], 0
    %s11 = scalar_lea.sflag [#allocation3], 1
    %12 = vsyncpa %s11, 0
    %13 = vsyncpa [#allocation5], 0
    %14 = vsyncpa [#allocation8], 0
    %15 = vsyncpa [#allocation11], 0
    %16 = vsyncpa [#allocation4], 0
    loop: start=0, step=1, limit=4
    $region2: #{tpu_custom_call.1} parent=1 // loop_pre_header
      _
    $region3: #{tpu_custom_call.1} parent=1 // loop_header
      %s18 = sphi 0, %s22
      %p19 = scmp.ge.s32.totalorder %s18, 4
      %s25 = sphi 0, %s37
      %s26 = sphi 0, %s33
      %s27 = sphi 0, %s25
      %s28 = sphi 0, %s26
      %s29 = sphi 0, %s27
      %s30 = sphi 0, %s28
      %s42 = sphi 0, %s44
      %s45 = sphi 0, %s42
      %s46 = sphi 0, %s45
      %s62 = sphi 0, %s46
      %s66 = sphi 0, %s66
      %s68 = sphi 0, %s66
      %s69 = sphi 0, %s68
      %s83 = sphi 0, %s69
      %s87 = sphi 0, %s87
      %s89 = sphi 0, %s87
      %s90 = sphi 0, %s89
      %s104 = sphi 0, %s90
      %s108 = sphi 0, %s108
      %s110 = sphi 0, %s108
      %s111 = sphi 0, %s110
      %s125 = sphi 0, %s111
      %s129 = sphi 0, %s129
      %s131 = sphi 0, %s129
      %s132 = sphi 0, %s131
      %s146 = sphi 0, %s132
      %s150 = sphi 0, %s150
      %s152 = sphi 0, %s150
      %s153 = sphi 0, %s152
      %s167 = sphi 0, %s153
    $region4: #{tpu_custom_call.1} parent=1 // loop_header_branch
      %21 = sbr.rel (%p19) target = $region8
    $region5: #{tpu_custom_call.1} parent=1 // loop_body
      %s23 = ssub.s32 %s18, 1
      %s24 = ssub.s32 %s18, 2
      %s31 = sadd.s32 1, %s26
      %p32 = scmp.ge.s32.totalorder %s31, 1
      %s33 = scalar_select %p32, 0, %s31
      %s34 = sadd.s32 1, %s25
      %s35 = scalar_select %p32, %s34, %s25
      %p36 = scmp.ge.s32.totalorder %s35, 2
      %s37 = scalar_select %p36, 0, %s35
      %s38 = ssub.s32 %s25, %s37
      %s39 = ssub.s32 %s26, %s33
      %s40 = sor.u32 %s38, %s39
      %p41 = scmp.eq.s32.totalorder %s40, 0
      %s43 = sadd.s32 %s42, 1
      %s44 = scalar_select %p41, %s42, %s43
      %p47 = pneg %p41
      %p48 = scmp.eq.s32.totalorder %s18, 1
      %p49 = por %p47, %p48
      %p50 = scmp.ne.s32.totalorder %s42, %s45
      %p51 = scmp.eq.s32.totalorder %s18, 0
      %p52 = por %p50, %p51
      %p53 = scmp.ne.s32.totalorder %s42, %s45
      %p54 = scmp.eq.s32.totalorder %s23, 1
      %p55 = por %p53, %p54
      %p56 = scmp.ne.s32.totalorder %s45, %s46
      %p57 = scmp.eq.s32.totalorder %s23, 0
      %p58 = por %p56, %p57
      %p59 = scmp.ne.s32.totalorder %s45, %s46
      %p60 = scmp.eq.s32.totalorder %s24, 1
      %p61 = por %p59, %p60
      %p63 = scmp.ne.s32.totalorder %s46, %s62
      %p64 = scmp.eq.s32.totalorder %s24, 0
      %p65 = por %p63, %p64
      %s67 = sadd.s32 %s66, 1
      %p70 = scmp.eq.s32.totalorder %s18, 1
      %p71 = scmp.ne.s32.totalorder %s66, %s68
      %p72 = scmp.eq.s32.totalorder %s18, 0
      %p73 = por %p71, %p72
      %p74 = scmp.ne.s32.totalorder %s66, %s68
      %p75 = scmp.eq.s32.totalorder %s23, 1
      %p76 = por %p74, %p75
      %p77 = scmp.ne.s32.totalorder %s68, %s69
      %p78 = scmp.eq.s32.totalorder %s23, 0
      %p79 = por %p77, %p78
      %p80 = scmp.ne.s32.totalorder %s68, %s69
      %p81 = scmp.eq.s32.totalorder %s24, 1
      %p82 = por %p80, %p81
      %p84 = scmp.ne.s32.totalorder %s69, %s83
      %p85 = scmp.eq.s32.totalorder %s24, 0
      %p86 = por %p84, %p85
      %s88 = sadd.s32 %s87, 1
      %p91 = scmp.eq.s32.totalorder %s18, 1
      %p92 = scmp.ne.s32.totalorder %s87, %s89
      %p93 = scmp.eq.s32.totalorder %s18, 0
      %p94 = por %p92, %p93
      %p95 = scmp.ne.s32.totalorder %s87, %s89
      %p96 = scmp.eq.s32.totalorder %s23, 1
      %p97 = por %p95, %p96
      %p98 = scmp.ne.s32.totalorder %s89, %s90
      %p99 = scmp.eq.s32.totalorder %s23, 0
      %p100 = por %p98, %p99
      %p101 = scmp.ne.s32.totalorder %s89, %s90
      %p102 = scmp.eq.s32.totalorder %s24, 1
      %p103 = por %p101, %p102
      %p105 = scmp.ne.s32.totalorder %s90, %s104
      %p106 = scmp.eq.s32.totalorder %s24, 0
      %p107 = por %p105, %p106
      %s109 = sadd.s32 %s108, 1
      %p112 = scmp.eq.s32.totalorder %s18, 1
      %p113 = scmp.ne.s32.totalorder %s108, %s110
      %p114 = scmp.eq.s32.totalorder %s18, 0
      %p115 = por %p113, %p114
      %p116 = scmp.ne.s32.totalorder %s108, %s110
      %p117 = scmp.eq.s32.totalorder %s23, 1
      %p118 = por %p116, %p117
      %p119 = scmp.ne.s32.totalorder %s110, %s111
      %p120 = scmp.eq.s32.totalorder %s23, 0
      %p121 = por %p119, %p120
      %p122 = scmp.ne.s32.totalorder %s110, %s111
      %p123 = scmp.eq.s32.totalorder %s24, 1
      %p124 = por %p122, %p123
      %p126 = scmp.ne.s32.totalorder %s111, %s125
      %p127 = scmp.eq.s32.totalorder %s24, 0
      %p128 = por %p126, %p127
      %s130 = sadd.s32 %s129, 1
      %p133 = scmp.eq.s32.totalorder %s18, 1
      %p134 = scmp.ne.s32.totalorder %s129, %s131
      %p135 = scmp.eq.s32.totalorder %s18, 0
      %p136 = por %p134, %p135
      %p137 = scmp.ne.s32.totalorder %s129, %s131
      %p138 = scmp.eq.s32.totalorder %s23, 1
      %p139 = por %p137, %p138
      %p140 = scmp.ne.s32.totalorder %s131, %s132
      %p141 = scmp.eq.s32.totalorder %s23, 0
      %p142 = por %p140, %p141
      %p143 = scmp.ne.s32.totalorder %s131, %s132
      %p144 = scmp.eq.s32.totalorder %s24, 1
      %p145 = por %p143, %p144
      %p147 = scmp.ne.s32.totalorder %s132, %s146
      %p148 = scmp.eq.s32.totalorder %s24, 0
      %p149 = por %p147, %p148
      %s151 = sadd.s32 %s150, 1
      %p154 = scmp.eq.s32.totalorder %s18, 1
      %p155 = scmp.ne.s32.totalorder %s150, %s152
      %p156 = scmp.eq.s32.totalorder %s18, 0
      %p157 = por %p155, %p156
      %p158 = scmp.ne.s32.totalorder %s150, %s152
      %p159 = scmp.eq.s32.totalorder %s23, 1
      %p160 = por %p158, %p159
      %p161 = scmp.ne.s32.totalorder %s152, %s153
      %p162 = scmp.eq.s32.totalorder %s23, 0
      %p163 = por %p161, %p162
      %p164 = scmp.ne.s32.totalorder %s152, %s153
      %p165 = scmp.eq.s32.totalorder %s24, 1
      %p166 = por %p164, %p165
      %p168 = scmp.ne.s32.totalorder %s153, %s167
      %p169 = scmp.eq.s32.totalorder %s24, 0
      %p170 = por %p168, %p169
      %p171 = scmp.le.s32.totalorder 1, %s18
      %p172 = scmp.lt.s32.totalorder %s18, 3
      %p173 = pnand %p171, %p172
      %p174 = pneg %p173
      // Predicated region
      $region9: #{tpu_custom_call.1} parent=5 // pred_check
        _
      $region10: #{tpu_custom_call.1} parent=5 // pred_check_branch
        %176 = sbr.rel (%p173) target = $region12
      $region11: #{tpu_custom_call.1} parent=5 // pred_region
        %s177 = ssub.s32 %s18, 1
        // Predicated region
        $region13: #{tpu_custom_call.1} parent=11 // pred_check
          %p178 = pneg %p79
        $region14: #{tpu_custom_call.1} parent=11 // pred_check_branch
          %180 = sbr.rel (%p178) target = $region16
        $region15: #{tpu_custom_call.1} parent=11 // pred_region
          %s182 = ssub.s32 16, 16
          %183 = vsyncadd [#allocation5], %s182
          %s185 = sshll.u32 %s1, 4
          %s186 = int_to_ptr.vmem [resolvable:$true] %s185
          %188 = dma.vmem_to_smem %s186, 16, [#allocation6], [#allocation5]
        $region16: #{tpu_custom_call.1} parent=11 // pred_fallthru
          _
        // Predicated region
        $region17: #{tpu_custom_call.1} parent=11 // pred_check
          %p189 = pneg %p100
        $region18: #{tpu_custom_call.1} parent=11 // pred_check_branch
          %191 = sbr.rel (%p189) target = $region20
        $region19: #{tpu_custom_call.1} parent=11 // pred_region
          %s193 = ssub.s32 32, 32
          %194 = vsyncadd [#allocation8], %s193
          %s196 = sshll.u32 %s2, 4
          %s197 = int_to_ptr.vmem [resolvable:$true] %s196
          %199 = dma.vmem_to_smem %s197, 32, [#allocation7], [#allocation8]
        $region20: #{tpu_custom_call.1} parent=11 // pred_fallthru
          _
        // Predicated region
        $region21: #{tpu_custom_call.1} parent=11 // pred_check
          %p200 = pneg %p121
        $region22: #{tpu_custom_call.1} parent=11 // pred_check_branch
          %202 = sbr.rel (%p200) target = $region24
        $region23: #{tpu_custom_call.1} parent=11 // pred_region
          %s204 = ssub.s32 32, 32
          %205 = vsyncadd [#allocation8], %s204
          %s207 = sshll.u32 %s3, 4
          %s208 = int_to_ptr.vmem [resolvable:$true] %s207
          %210 = dma.vmem_to_smem %s208, 32, [#allocation9], [#allocation8]
        $region24: #{tpu_custom_call.1} parent=11 // pred_fallthru
          _
        // Predicated region
        $region25: #{tpu_custom_call.1} parent=11 // pred_check
          %p211 = pneg %p142
        $region26: #{tpu_custom_call.1} parent=11 // pred_check_branch
          %213 = sbr.rel (%p211) target = $region28
        $region27: #{tpu_custom_call.1} parent=11 // pred_region
          %s215 = ssub.s32 32, 32
          %216 = vsyncadd [#allocation11], %s215
          %s218 = sshll.u32 %s4, 4
          %s219 = int_to_ptr.vmem [resolvable:$true] %s218
          %221 = dma.vmem_to_smem %s219, 32, [#allocation10], [#allocation11]
        $region28: #{tpu_custom_call.1} parent=11 // pred_fallthru
          _
      $region12: #{tpu_custom_call.1} parent=5 // pred_fallthru
        _
      %p222 = scmp.lt.s32.totalorder %s18, 2
      // Predicated region
      $region29: #{tpu_custom_call.1} parent=5 // pred_check
        %p223 = pneg %p222
      $region30: #{tpu_custom_call.1} parent=5 // pred_check_branch
        %225 = sbr.rel (%p223) target = $region32
      $region31: #{tpu_custom_call.1} parent=5 // pred_region
        // Predicated region
        $region33: #{tpu_custom_call.1} parent=31 // pred_check
          %p226 = pneg %p52
        $region34: #{tpu_custom_call.1} parent=31 // pred_check_branch
          %228 = sbr.rel (%p226) target = $region36
        $region35: #{tpu_custom_call.1} parent=31 // pred_region
          %s229 = sand.u32 %s42, 1
          %s230 = scalar_lea.sflag [#allocation3], %s229
          %s231 = sand.u32 %s42, 1
          %s232 = smul.addr %s231, 32
          %s233 = scalar_lea.vmem [#allocation2], %s232
          %s235 = ssub.s32 512, 512
          %236 = vsyncadd %s230, %s235
          %s237 = smul.addr %s25, 4
          %s238 = sadd.s32 %s26, %s237
          %s239 = smul.addr %s238, 128
          %s240 = scalar_lea.hbm %s0, %s239
          %s241 = sshll.u32 %s233, 4
          %s242 = int_to_ptr.vmem [resolvable:$true] %s241
          %247 = dma.hbm_to_vmem [thread:$0]  %s240, 512, %s242, %s230, 128, 128, 8
        $region36: #{tpu_custom_call.1} parent=31 // pred_fallthru
          _
      $region32: #{tpu_custom_call.1} parent=5 // pred_fallthru
        _
      %p248 = scmp.le.s32.totalorder 1, %s18
      %p249 = scmp.lt.s32.totalorder %s18, 3
      %p250 = pnand %p248, %p249
      %p251 = pneg %p250
      // Predicated region
      $region37: #{tpu_custom_call.1} parent=5 // pred_check
        _
      $region38: #{tpu_custom_call.1} parent=5 // pred_check_branch
        %253 = sbr.rel (%p250) target = $region40
      $region39: #{tpu_custom_call.1} parent=5 // pred_region
        %s254 = ssub.s32 %s18, 1
        %s255 = sand.u32 %s45, 1
        %s256 = scalar_lea.sflag [#allocation3], %s255
        %s257 = sand.u32 %s45, 1
        %s258 = smul.addr %s257, 32
        %s259 = scalar_lea.vmem [#allocation2], %s258
        // Predicated region
        $region41: #{tpu_custom_call.1} parent=39 // pred_check
          %p260 = pneg %p58
        $region42: #{tpu_custom_call.1} parent=39 // pred_check_branch
          %262 = sbr.rel (%p260) target = $region44
        $region43: #{tpu_custom_call.1} parent=39 // pred_region
          %263 = dma.done %s256, 512
        $region44: #{tpu_custom_call.1} parent=39 // pred_fallthru
          _
        // Predicated region
        $region45: #{tpu_custom_call.1} parent=39 // pred_check
          %p264 = pneg %p79
        $region46: #{tpu_custom_call.1} parent=39 // pred_check_branch
          %266 = sbr.rel (%p264) target = $region48
        $region47: #{tpu_custom_call.1} parent=39 // pred_region
          %267 = dma.done [#allocation5], 16
        $region48: #{tpu_custom_call.1} parent=39 // pred_fallthru
          _
        // Predicated region
        $region49: #{tpu_custom_call.1} parent=39 // pred_check
          %p268 = pneg %p100
        $region50: #{tpu_custom_call.1} parent=39 // pred_check_branch
          %270 = sbr.rel (%p268) target = $region52
        $region51: #{tpu_custom_call.1} parent=39 // pred_region
          %271 = dma.done [#allocation8], 32
        $region52: #{tpu_custom_call.1} parent=39 // pred_fallthru
          _
        // Predicated region
        $region53: #{tpu_custom_call.1} parent=39 // pred_check
          %p272 = pneg %p121
        $region54: #{tpu_custom_call.1} parent=39 // pred_check_branch
          %274 = sbr.rel (%p272) target = $region56
        $region55: #{tpu_custom_call.1} parent=39 // pred_region
          %275 = dma.done [#allocation8], 32
        $region56: #{tpu_custom_call.1} parent=39 // pred_fallthru
          _
        // Predicated region
        $region57: #{tpu_custom_call.1} parent=39 // pred_check
          %p276 = pneg %p142
        $region58: #{tpu_custom_call.1} parent=39 // pred_check_branch
          %278 = sbr.rel (%p276) target = $region60
        $region59: #{tpu_custom_call.1} parent=39 // pred_region
          %279 = dma.done [#allocation11], 32
        $region60: #{tpu_custom_call.1} parent=39 // pred_fallthru
          _
        %280 = sfence
        %s281 = sand.u32 %s45, 1
        %s282 = scalar_lea.sflag [#allocation3], %s281
        %s283 = sand.u32 %s45, 1
        %s284 = smul.addr %s283, 32
        %s285 = scalar_lea.vmem [#allocation2], %s284
        %p286 = pneg %p58
        %p287 = pneg %p55
        %p288 = pneg %p79
        %p289 = pneg %p76
        %p290 = pneg %p100
        %p291 = pneg %p97
        %p292 = pneg %p121
        %p293 = pneg %p118
        %p294 = pneg %p142
        %p295 = pneg %p139
        %p296 = pneg %p163
        %p297 = pneg %p160
        %p298 = scmp.eq.s32.totalorder %s28, 0
        // Predicated region
        $region61: #{tpu_custom_call.1} parent=39 // pred_check
          %p299 = pneg %p298
        $region62: #{tpu_custom_call.1} parent=39 // pred_check_branch
          %301 = sbr.rel (%p299) target = $region64
        $region63: #{tpu_custom_call.1} parent=39 // pred_region
          %s302 = smul.u32 %s27, 128
          %s303 = scalar_lea.smem [#allocation12], %s302
          %304 = sst [smem:[%s303]] 0
          %s305 = sadd.s32 %s302, 1
          %s306 = scalar_lea.smem [#allocation12], %s305
          %307 = sst [smem:[%s306]] 0
          %s308 = sadd.s32 %s302, 2
          %s309 = scalar_lea.smem [#allocation12], %s308
          %310 = sst [smem:[%s309]] 0
          %s311 = sadd.s32 %s302, 3
          %s312 = scalar_lea.smem [#allocation12], %s311
          %313 = sst [smem:[%s312]] 0
        $region64: #{tpu_custom_call.1} parent=39 // pred_fallthru
          _
        %v314 = vld [vmem:[%s259] sm:$0xff]
        %s315 = scalar_lea.vmem %s259, 8 [#allocation2]
        %v316 = vld [vmem:[%s315] sm:$0xff]
        %s317 = scalar_lea.vmem %s259, 16 [#allocation2]
        %v318 = vld [vmem:[%s317] sm:$0xff]
        %s319 = scalar_lea.vmem %s259, 24 [#allocation2]
        %v320 = vld [vmem:[%s319] sm:$0xff]
        %v321 = vlaneseq
        %v322 = vshrl.u32 %v321, 7
        %v323 = vlaneseq
        %v324 = vand.u32 %v323, 127
        %s325 = smul.u32 %s28, 1024
        %v326 = vmul.u32 %v322, 128
        %v327 = vstv %s325
        %v328 = vadd.s32 %v327, %v326
        %v329 = vadd.s32 %v328, %v324
        %vm330 = vcmp.lt.s32.totalorder %v329, 128
        %s331 = sld [smem:[#allocation6]]
        %s332 = sld [smem:[#allocation6 + $0x1]]
        %s333 = sld [smem:[#allocation6 + $0x2]]
        %s334 = sld [smem:[#allocation6 + $0x3]]
        %s335 = sld [smem:[#allocation6 + $0x4]]
        %s336 = sld [smem:[#allocation6 + $0x5]]
        %s337 = sld [smem:[#allocation6 + $0x6]]
        %s338 = sld [smem:[#allocation6 + $0x7]]
        %s339 = sld [smem:[#allocation6 + $0x8]]
        %v340 = vstv %s331
        %v341 = vmul.f32 %v340, %v314
        %v342 = vstv %s332
        %v343 = vmul.f32 %v342, %v316
        %v344 = vadd.f32 %v341, %v343
        %v345 = vstv %s333
        %v346 = vadd.f32 %v344, %v345
        %v347 = vstv %s334
        %v348 = vmul.f32 %v347, %v314
        %v349 = vstv %s335
        %v350 = vmul.f32 %v349, %v316
        %v351 = vadd.f32 %v348, %v350
        %v352 = vstv %s336
        %v353 = vadd.f32 %v351, %v352
        %v354 = vstv %s337
        %v355 = vmul.f32 %v354, %v314
        %v356 = vstv %s338
        %v357 = vmul.f32 %v356, %v316
        %v358 = vadd.f32 %v355, %v357
        %v359 = vstv %s339
        %v360 = vadd.f32 %v358, %v359
        %v361 = vmul.f32 %v340, %v318
        %v362 = vmul.f32 %v342, %v320
        %v363 = vadd.f32 %v361, %v362
        %v364 = vadd.f32 %v363, %v345
        %v365 = vmul.f32 %v347, %v318
        %v366 = vmul.f32 %v349, %v320
        %v367 = vadd.f32 %v365, %v366
        %v368 = vadd.f32 %v367, %v352
        %v369 = vmul.f32 %v354, %v318
        %v370 = vmul.f32 %v356, %v320
        %v371 = vadd.f32 %v369, %v370
        %v372 = vadd.f32 %v371, %v359
        %s373 = smul.u32 %s27, 128
        %s374 = sld [smem:[#allocation9 + %s373]]
        %s375 = sadd.s32 %s373, 1
        %s376 = sld [smem:[#allocation9 + %s375]]
        %s377 = sadd.s32 %s373, 2
        %s378 = sld [smem:[#allocation9 + %s377]]
        %s379 = sld [smem:[#allocation7 + %s373]]
        %s380 = sld [smem:[#allocation7 + %s375]]
        %s381 = sld [smem:[#allocation7 + %s377]]
        %s382 = sadd.s32 %s373, 3
        %s383 = sld [smem:[#allocation7 + %s382]]
        %s384 = sadd.s32 %s373, 4
        %s385 = sld [smem:[#allocation7 + %s384]]
        %s386 = sadd.s32 %s373, 5
        %s387 = sld [smem:[#allocation7 + %s386]]
        %s388 = sadd.s32 %s373, 6
        %s389 = sld [smem:[#allocation7 + %s388]]
        %s390 = sadd.s32 %s373, 7
        %s391 = sld [smem:[#allocation7 + %s390]]
        %s392 = sadd.s32 %s373, 8
        %s393 = sld [smem:[#allocation7 + %s392]]
        %s394 = sld [smem:[#allocation10 + %s373]]
        %s395 = sld [smem:[#allocation10 + %s375]]
        %s396 = sld [smem:[#allocation10 + %s377]]
        %s397 = sld [smem:[#allocation10 + %s382]]
        %v398 = vstv %s379
        %v399 = vmul.f32 %v398, %v364
        %v400 = vstv %s380
        %v401 = vmul.f32 %v400, %v368
        %v402 = vadd.f32 %v399, %v401
        %v403 = vstv %s381
        %v404 = vmul.f32 %v403, %v372
        %v405 = vadd.f32 %v402, %v404
        %v406 = vstv %s383
        %v407 = vmul.f32 %v406, %v364
        %v408 = vstv %s385
        %v409 = vmul.f32 %v408, %v368
        %v410 = vadd.f32 %v407, %v409
        %v411 = vstv %s387
        %v412 = vmul.f32 %v411, %v372
        %v413 = vadd.f32 %v410, %v412
        %v414 = vstv %s389
        %v415 = vmul.f32 %v414, %v364
        %v416 = vstv %s391
        %v417 = vmul.f32 %v416, %v368
        %v418 = vadd.f32 %v415, %v417
        %v419 = vstv %s393
        %v420 = vmul.f32 %v419, %v372
        %v421 = vadd.f32 %v418, %v420
        %v422 = vmul.f32 %v413, %v360
        %v423 = vmul.f32 %v421, %v353
        %v424 = vsub.f32 %v422, %v423
        %v425 = vmul.f32 %v421, %v346
        %v426 = vmul.f32 %v405, %v360
        %v427 = vsub.f32 %v425, %v426
        %v428 = vmul.f32 %v405, %v353
        %v429 = vmul.f32 %v413, %v346
        %v430 = vsub.f32 %v428, %v429
        %v431 = vmul.f32 %v353, %v430
        %v432 = vmul.f32 %v360, %v427
        %v433 = vsub.f32 %v431, %v432
        %v434 = vmul.f32 %v360, %v424
        %v435 = vmul.f32 %v346, %v430
        %v436 = vsub.f32 %v434, %v435
        %v437 = vmul.f32 %v346, %v427
        %v438 = vmul.f32 %v353, %v424
        %v439 = vsub.f32 %v437, %v438
        %v440 = vmul.f32 %v427, %v421
        %v441 = vmul.f32 %v430, %v413
        %v442 = vsub.f32 %v440, %v441
        %v443 = vmul.f32 %v430, %v405
        %v444 = vmul.f32 %v424, %v421
        %v445 = vsub.f32 %v443, %v444
        %v446 = vmul.f32 %v424, %v413
        %v447 = vmul.f32 %v427, %v405
        %v448 = vsub.f32 %v446, %v447
        %v449 = vstv %s374
        %v450 = vmul.f32 %v449, %v442
        %v451 = vstv %s376
        %v452 = vmul.f32 %v451, %v445
        %v453 = vadd.f32 %v450, %v452
        %v454 = vstv %s378
        %v455 = vmul.f32 %v454, %v448
        %v456 = vadd.f32 %v453, %v455
        %v457 = vmul.f32 %v346, %v442
        %v458 = vmul.f32 %v353, %v445
        %v459 = vadd.f32 %v457, %v458
        %v460 = vmul.f32 %v360, %v448
        %v461 = vadd.f32 %v459, %v460
        %v462 = vrcp.pop %v461
        %v463 = vmul.f32 %v456, %v462
        %v464 = vmul.f32 %v463, %v346
        %v465 = vmul.f32 %v463, %v353
        %v466 = vmul.f32 %v463, %v360
        %v467 = vmul.f32 %v449, %v433
        %v468 = vmul.f32 %v451, %v436
        %v469 = vadd.f32 %v467, %v468
        %v470 = vmul.f32 %v454, %v439
        %v471 = vadd.f32 %v469, %v470
        %v472 = vsub.f32 0.0, %v471
        %v473 = vmul.f32 %v405, %v433
        %v474 = vmul.f32 %v413, %v436
        %v475 = vadd.f32 %v473, %v474
        %v476 = vmul.f32 %v421, %v439
        %v477 = vadd.f32 %v475, %v476
        %v478 = vrcp.pop %v477
        %v479 = vmul.f32 %v472, %v478
        %v480 = vmul.f32 %v479, %v405
        %v481 = vadd.f32 %v449, %v480
        %v482 = vmul.f32 %v479, %v413
        %v483 = vadd.f32 %v451, %v482
        %v484 = vmul.f32 %v479, %v421
        %v485 = vadd.f32 %v454, %v484
        %v486 = vadd.f32 %v464, %v481
        %v487 = vmul.f32 %v486, 0.5
        %v488 = vadd.f32 %v465, %v483
        %v489 = vmul.f32 %v488, 0.5
        %v490 = vadd.f32 %v466, %v485
        %v491 = vmul.f32 %v490, 0.5
        %v492 = vstv %s394
        %v493 = vmul.f32 %v492, %v487
        %v494 = vstv %s395
        %v495 = vmul.f32 %v494, %v489
        %v496 = vadd.f32 %v493, %v495
        %v497 = vstv %s396
        %v498 = vmul.f32 %v497, %v491
        %v499 = vadd.f32 %v496, %v498
        %v500 = vstv %s397
        %v501 = vadd.f32 %v499, %v500
        %vm502 = vcmp.gt.f32.partialorder %v491, 0.0
        %vm503 = vcmp.gt.f32.partialorder %v501, 0.0
        %vm504 = vmand %vm502, %vm503
        %vm505 = vmand %vm504, %vm330
        %vm506 = vcmp.lt.f32.partialorder %v491, 0.0
        %vm507 = vcmp.lt.f32.partialorder %v501, 0.0
        %vm508 = vmand %vm506, %vm507
        %vm509 = vmand %vm508, %vm330
        %v510 = vsel %vm505, 1, 0
        %v511 = vand.u32 %v510, 65535
        %v512 = vshrl.u32 %v510, 16
        %v513 = vcvt.s32.f32 %v511
        %v514 = vcvt.s32.f32 %v512
        %515 = vadd.xlane.f32.xlu0 %v513
        %v516 = vpop.xlane.xlu0 %515
        %517 = vadd.xlane.f32.xlu0 %v514
        %v518 = vpop.xlane.xlu0 %517
        %v519 = vcvt.f32.s32 %v516
        %v520 = vcvt.f32.s32 %v518
        %v521 = vshll.u32 %v520, 16
        %v522 = vadd.s32 %v521, %v519
        %v523 = vrot.slane %v522, 4
        %v524 = vadd.s32 %v522, %v523
        %v525 = vrot.slane %v524, 2
        %v526 = vadd.s32 %v524, %v525
        %v527 = vrot.slane %v526, 1
        %v528 = vadd.s32 %v526, %v527
        %s529 = vtos %v528
        %v530 = vsel %vm509, 1, 0
        %v531 = vand.u32 %v530, 65535
        %v532 = vshrl.u32 %v530, 16
        %v533 = vcvt.s32.f32 %v531
        %v534 = vcvt.s32.f32 %v532
        %535 = vadd.xlane.f32.xlu0 %v533
        %v536 = vpop.xlane.xlu0 %535
        %537 = vadd.xlane.f32.xlu0 %v534
        %v538 = vpop.xlane.xlu0 %537
        %v539 = vcvt.f32.s32 %v536
        %v540 = vcvt.f32.s32 %v538
        %v541 = vshll.u32 %v540, 16
        %v542 = vadd.s32 %v541, %v539
        %v543 = vrot.slane %v542, 4
        %v544 = vadd.s32 %v542, %v543
        %v545 = vrot.slane %v544, 2
        %v546 = vadd.s32 %v544, %v545
        %v547 = vrot.slane %v546, 1
        %v548 = vadd.s32 %v546, %v547
        %s549 = vtos %v548
        %s550 = sld [smem:[#allocation12 + %s373]]
        %s551 = sadd.s32 %s550, %s529
        %s552 = scalar_lea.smem [#allocation12], %s373
        %553 = sst [smem:[%s552]] %s551
        %s554 = sld [smem:[#allocation12 + %s377]]
        %s555 = sadd.s32 %s554, %s549
        %s556 = scalar_lea.smem [#allocation12], %s377
        %557 = sst [smem:[%s556]] %s555
        %s558 = sadd.s32 %s373, 9
        %s559 = sld [smem:[#allocation7 + %s558]]
        %s560 = sadd.s32 %s373, 10
        %s561 = sld [smem:[#allocation7 + %s560]]
        %s562 = sadd.s32 %s373, 11
        %s563 = sld [smem:[#allocation7 + %s562]]
        %s564 = sadd.s32 %s373, 12
        %s565 = sld [smem:[#allocation7 + %s564]]
        %s566 = sadd.s32 %s373, 13
        %s567 = sld [smem:[#allocation7 + %s566]]
        %s568 = sadd.s32 %s373, 14
        %s569 = sld [smem:[#allocation7 + %s568]]
        %s570 = sadd.s32 %s373, 15
        %s571 = sld [smem:[#allocation7 + %s570]]
        %s572 = sadd.s32 %s373, 16
        %s573 = sld [smem:[#allocation7 + %s572]]
        %s574 = sadd.s32 %s373, 17
        %s575 = sld [smem:[#allocation7 + %s574]]
        %s576 = sld [smem:[#allocation10 + %s384]]
        %s577 = sld [smem:[#allocation10 + %s386]]
        %s578 = sld [smem:[#allocation10 + %s388]]
        %s579 = sld [smem:[#allocation10 + %s390]]
        %v580 = vstv %s559
        %v581 = vmul.f32 %v580, %v364
        %v582 = vstv %s561
        %v583 = vmul.f32 %v582, %v368
        %v584 = vadd.f32 %v581, %v583
        %v585 = vstv %s563
        %v586 = vmul.f32 %v585, %v372
        %v587 = vadd.f32 %v584, %v586
        %v588 = vstv %s565
        %v589 = vmul.f32 %v588, %v364
        %v590 = vstv %s567
        %v591 = vmul.f32 %v590, %v368
        %v592 = vadd.f32 %v589, %v591
        %v593 = vstv %s569
        %v594 = vmul.f32 %v593, %v372
        %v595 = vadd.f32 %v592, %v594
        %v596 = vstv %s571
        %v597 = vmul.f32 %v596, %v364
        %v598 = vstv %s573
        %v599 = vmul.f32 %v598, %v368
        %v600 = vadd.f32 %v597, %v599
        %v601 = vstv %s575
        %v602 = vmul.f32 %v601, %v372
        %v603 = vadd.f32 %v600, %v602
        %v604 = vmul.f32 %v595, %v360
        %v605 = vmul.f32 %v603, %v353
        %v606 = vsub.f32 %v604, %v605
        %v607 = vmul.f32 %v603, %v346
        %v608 = vmul.f32 %v587, %v360
        %v609 = vsub.f32 %v607, %v608
        %v610 = vmul.f32 %v587, %v353
        %v611 = vmul.f32 %v595, %v346
        %v612 = vsub.f32 %v610, %v611
        %v613 = vmul.f32 %v353, %v612
        %v614 = vmul.f32 %v360, %v609
        %v615 = vsub.f32 %v613, %v614
        %v616 = vmul.f32 %v360, %v606
        %v617 = vmul.f32 %v346, %v612
        %v618 = vsub.f32 %v616, %v617
        %v619 = vmul.f32 %v346, %v609
        %v620 = vmul.f32 %v353, %v606
        %v621 = vsub.f32 %v619, %v620
        %v622 = vmul.f32 %v609, %v603
        %v623 = vmul.f32 %v612, %v595
        %v624 = vsub.f32 %v622, %v623
        %v625 = vmul.f32 %v612, %v587
        %v626 = vmul.f32 %v606, %v603
        %v627 = vsub.f32 %v625, %v626
        %v628 = vmul.f32 %v606, %v595
        %v629 = vmul.f32 %v609, %v587
        %v630 = vsub.f32 %v628, %v629
        %v631 = vmul.f32 %v449, %v624
        %v632 = vmul.f32 %v451, %v627
        %v633 = vadd.f32 %v631, %v632
        %v634 = vmul.f32 %v454, %v630
        %v635 = vadd.f32 %v633, %v634
        %v636 = vmul.f32 %v346, %v624
        %v637 = vmul.f32 %v353, %v627
        %v638 = vadd.f32 %v636, %v637
        %v639 = vmul.f32 %v360, %v630
        %v640 = vadd.f32 %v638, %v639
        %v641 = vrcp.pop %v640
        %v642 = vmul.f32 %v635, %v641
        %v643 = vmul.f32 %v642, %v346
        %v644 = vmul.f32 %v642, %v353
        %v645 = vmul.f32 %v642, %v360
        %v646 = vmul.f32 %v449, %v615
        %v647 = vmul.f32 %v451, %v618
        %v648 = vadd.f32 %v646, %v647
        %v649 = vmul.f32 %v454, %v621
        %v650 = vadd.f32 %v648, %v649
        %v651 = vsub.f32 0.0, %v650
        %v652 = vmul.f32 %v587, %v615
        %v653 = vmul.f32 %v595, %v618
        %v654 = vadd.f32 %v652, %v653
        %v655 = vmul.f32 %v603, %v621
        %v656 = vadd.f32 %v654, %v655
        %v657 = vrcp.pop %v656
        %v658 = vmul.f32 %v651, %v657
        %v659 = vmul.f32 %v658, %v587
        %v660 = vadd.f32 %v449, %v659
        %v661 = vmul.f32 %v658, %v595
        %v662 = vadd.f32 %v451, %v661
        %v663 = vmul.f32 %v658, %v603
        %v664 = vadd.f32 %v454, %v663
        %v665 = vadd.f32 %v643, %v660
        %v666 = vmul.f32 %v665, 0.5
        %v667 = vadd.f32 %v644, %v662
        %v668 = vmul.f32 %v667, 0.5
        %v669 = vadd.f32 %v645, %v664
        %v670 = vmul.f32 %v669, 0.5
        %v671 = vstv %s576
        %v672 = vmul.f32 %v671, %v666
        %v673 = vstv %s577
        %v674 = vmul.f32 %v673, %v668
        %v675 = vadd.f32 %v672, %v674
        %v676 = vstv %s578
        %v677 = vmul.f32 %v676, %v670
        %v678 = vadd.f32 %v675, %v677
        %v679 = vstv %s579
        %v680 = vadd.f32 %v678, %v679
        %vm681 = vcmp.gt.f32.partialorder %v670, 0.0
        %vm682 = vcmp.gt.f32.partialorder %v680, 0.0
        %vm683 = vmand %vm681, %vm682
        %vm684 = vmand %vm683, %vm330
        %vm685 = vcmp.lt.f32.partialorder %v670, 0.0
        %vm686 = vcmp.lt.f32.partialorder %v680, 0.0
        %vm687 = vmand %vm685, %vm686
        %vm688 = vmand %vm687, %vm330
        %v689 = vsel %vm684, 1, 0
        %v690 = vand.u32 %v689, 65535
        %v691 = vshrl.u32 %v689, 16
        %v692 = vcvt.s32.f32 %v690
        %v693 = vcvt.s32.f32 %v691
        %694 = vadd.xlane.f32.xlu0 %v692
        %v695 = vpop.xlane.xlu0 %694
        %696 = vadd.xlane.f32.xlu0 %v693
        %v697 = vpop.xlane.xlu0 %696
        %v698 = vcvt.f32.s32 %v695
        %v699 = vcvt.f32.s32 %v697
        %v700 = vshll.u32 %v699, 16
        %v701 = vadd.s32 %v700, %v698
        %v702 = vrot.slane %v701, 4
        %v703 = vadd.s32 %v701, %v702
        %v704 = vrot.slane %v703, 2
        %v705 = vadd.s32 %v703, %v704
        %v706 = vrot.slane %v705, 1
        %v707 = vadd.s32 %v705, %v706
        %s708 = vtos %v707
        %v709 = vsel %vm688, 1, 0
        %v710 = vand.u32 %v709, 65535
        %v711 = vshrl.u32 %v709, 16
        %v712 = vcvt.s32.f32 %v710
        %v713 = vcvt.s32.f32 %v711
        %714 = vadd.xlane.f32.xlu0 %v712
        %v715 = vpop.xlane.xlu0 %714
        %716 = vadd.xlane.f32.xlu0 %v713
        %v717 = vpop.xlane.xlu0 %716
        %v718 = vcvt.f32.s32 %v715
        %v719 = vcvt.f32.s32 %v717
        %v720 = vshll.u32 %v719, 16
        %v721 = vadd.s32 %v720, %v718
        %v722 = vrot.slane %v721, 4
        %v723 = vadd.s32 %v721, %v722
        %v724 = vrot.slane %v723, 2
        %v725 = vadd.s32 %v723, %v724
        %v726 = vrot.slane %v725, 1
        %v727 = vadd.s32 %v725, %v726
        %s728 = vtos %v727
        %s729 = sld [smem:[#allocation12 + %s375]]
        %s730 = sadd.s32 %s729, %s708
        %s731 = scalar_lea.smem [#allocation12], %s375
        %732 = sst [smem:[%s731]] %s730
        %s733 = sld [smem:[#allocation12 + %s382]]
        %s734 = sadd.s32 %s733, %s728
        %s735 = scalar_lea.smem [#allocation12], %s382
        %736 = sst [smem:[%s735]] %s734
        // Predicated region
        $region65: #{tpu_custom_call.1} parent=39 // pred_check
          %p737 = pneg %p160
        $region66: #{tpu_custom_call.1} parent=39 // pred_check_branch
          %739 = sbr.rel (%p737) target = $region68
        $region67: #{tpu_custom_call.1} parent=39 // pred_region
          %s741 = ssub.s32 32, 32
          %742 = vsyncadd [#allocation4], %s741
          %745 = dma.smem_to_hbm [#allocation12], 32, %s5, [#allocation4]
        $region68: #{tpu_custom_call.1} parent=39 // pred_fallthru
          _
        // Predicated region
        $region69: #{tpu_custom_call.1} parent=39 // pred_check
          %p746 = pneg %p160
        $region70: #{tpu_custom_call.1} parent=39 // pred_check_branch
          %748 = sbr.rel (%p746) target = $region72
        $region71: #{tpu_custom_call.1} parent=39 // pred_region
          %749 = dma.done [#allocation4], 32
        $region72: #{tpu_custom_call.1} parent=39 // pred_fallthru
          _
        %750 = sfence
      $region40: #{tpu_custom_call.1} parent=5 // pred_fallthru
        _
      %p751 = scmp.le.s32.totalorder 2, %s18
      // Predicated region
      $region73: #{tpu_custom_call.1} parent=5 // pred_check
        %p752 = pneg %p751
      $region74: #{tpu_custom_call.1} parent=5 // pred_check_branch
        %754 = sbr.rel (%p752) target = $region76
      $region75: #{tpu_custom_call.1} parent=5 // pred_region
        %s755 = ssub.s32 %s18, 2
      $region76: #{tpu_custom_call.1} parent=5 // pred_fallthru
        _
    $region6: #{tpu_custom_call.1} parent=1 // loop_footer
      %s22 = sadd.s32 1, %s18
    $region7: #{tpu_custom_call.1} parent=1 // loop_footer_branch
      %17 = sbr.rel target = $region3
    $region8: #{tpu_custom_call.1} parent=1 // loop_exit
      _
    %756 = vsyncpa [#allocation3], 1
    %s757 = scalar_lea.sflag [#allocation3], 1
    %758 = vsyncpa %s757, 1
    %759 = vsyncpa [#allocation4], 1
    %s760 = scalar_lea.sflag [#allocation4], 1
    %761 = vsyncpa %s760, 1
    %762 = vsyncpa [#allocation5], 1
    %s763 = scalar_lea.sflag [#allocation5], 1
    %764 = vsyncpa %s763, 1
    %765 = vsyncpa [#allocation8], 1
    %766 = vsyncpa [#allocation11], 1

</llo_original>
